<compile_context>
chip_gen: v7x
topology: tpu7x:2x2x1
jax: 0.10.0
libtpu: 0.0.40
codegen_flags: <defaults>
</compile_context>

<pallas_src>
import functools

import jax
import jax.numpy as jnp
from jax.experimental import pallas as pl
from jax.experimental.pallas import tpu as pltpu


def _round_up(x, m):
    return ((x + m - 1) // m) * m


def _vmem_capacity_bytes():
    # Conservative fallback (v7x has 64 MiB per TensorCore).
    try:
        return int(pltpu.get_tpu_info().vmem_capacity_bytes)
    except Exception:
        return 64 * 1024 * 1024


def _num_tensorcores():
    # Best effort: only used to make sure the parallel row axis has >= 2 steps
    # on multi-TensorCore chips (v7x).  Falls back to 1 (no-op) if unknown.
    try:
        d = jax.devices()[0]
        for attr in ("num_cores", "core_count"):
            v = getattr(d, attr, None)
            if isinstance(v, int) and v > 0:
                return v
    except Exception:
        pass
    return 1


def _pick_tv(V, tv_max):
    """Largest 128-multiple vocab tile <= tv_max, preferring exact divisors of
    the 128-aligned vocab (minimizes padding and the post-kernel slice)."""
    v128 = _round_up(V, 128)
    tv_max = max(128, min((tv_max // 128) * 128, v128))
    best = 128
    for tv in range(tv_max, 127, -128):
        if v128 % tv == 0:
            best = tv
            break
    if best >= min(512, tv_max, v128):
        return best
    return tv_max


def _pick_tm(M, tm_max):
    """Largest 8-multiple row tile <= tm_max, preferring exact divisors of the
    8-aligned row count."""
    m8 = _round_up(M, 8)
    tm_max = max(8, min((tm_max // 8) * 8, m8))
    best = 8
    for tm in range(tm_max, 7, -8):
        if m8 % tm == 0:
            best = tm
            break
    if best >= min(64, tm_max, m8):
        return best
    return tm_max


def _mlm_kernel(x_ref, w_ref, b_ref, o_ref, m_ref, l_ref, *, nv, tv):
    # x_ref : (tm, H)      activations (native dtype; bf16 feeds MXU directly)
    # w_ref : (H, tv)      pre-transposed weight tile
    # b_ref : (1, tv)      bias tile
    # o_ref : (tm, V_pad)  resident output block (raw logits -> log-probs)
    # m_ref : (tm, 1) f32  running max        (online log-sum-exp state)
    # l_ref : (tm, 1) f32  running sum-of-exp
    j = pl.program_id(1)

    @pl.when(j == 0)
    def _init():
        m_ref[...] = jnp.full_like(m_ref, -jnp.inf)
        l_ref[...] = jnp.zeros_like(l_ref)

    # (tm, tv) logits tile on the MXU with f32 accumulation.
    logits = jnp.dot(x_ref[...], w_ref[...], preferred_element_type=jnp.float32)
    logits = logits + b_ref[...].astype(jnp.float32)

    # Online log-sum-exp update over the vocab axis.
    m_old = m_ref[...]
    m_new = jnp.maximum(m_old, jnp.max(logits, axis=-1, keepdims=True))
    l_ref[...] = l_ref[...] * jnp.exp(m_old - m_new) + jnp.sum(
        jnp.exp(logits - m_new), axis=-1, keepdims=True
    )
    m_ref[...] = m_new

    # Raw biased logits go straight into the resident output block.
    # Column offset is a multiple of 128 -> aligned, unmasked vector stores.
    col = pl.multiple_of(j * tv, 128)
    o_ref[:, pl.ds(col, tv)] = logits.astype(o_ref.dtype)

    # Last vocab tile: one fused pass subtracting the log-sum-exp.
    @pl.when(j == nv - 1)
    def _finalize():
        lse = m_ref[...] + jnp.log(l_ref[...])
        o_ref[...] = (o_ref[...].astype(jnp.float32) - lse).astype(o_ref.dtype)


@functools.partial(jax.jit, static_argnames=("tm", "tv", "out_dtype"))
def masked_language_model(x, weight, bias, *, tm=512, tv=1024,
                          out_dtype=jnp.float32):
    """Fused Linear(H -> V) + LogSoftmax(dim=-1).

    x:      (B, S, H) activations.
    weight: (V, H)    nn.Linear weight (PyTorch layout).
    bias:   (V,)      nn.Linear bias.

    Returns log-probabilities (B, S, V) in `out_dtype` (f32 default; pass
    jnp.bfloat16 to halve output VMEM/HBM traffic at ~1e-2 abs accuracy).
    """
    B, S, H = x.shape
    V = weight.shape[0]
    M = B * S

    x_bytes = jnp.dtype(x.dtype).itemsize
    w_bytes = jnp.dtype(weight.dtype).itemsize
    o_bytes = jnp.dtype(out_dtype).itemsize

    vmem_cap = _vmem_capacity_bytes()

    # ---- VMEM-budget-aware tile selection --------------------------------
    tv_eff = _pick_tv(V, tv)
    V_pad = _round_up(V, tv_eff)

    # Budget ~65% of physical VMEM for: double-buffered resident output block
    # + double-buffered x / W^T tiles (+ bias, scratch, compiler headroom).
    budget = int(vmem_cap * 0.65)
    fixed = 2 * tv_eff * H * w_bytes + 2 * tv_eff * 4 + (1 << 20)
    per_row = 2 * V_pad * o_bytes + 2 * H * x_bytes + 16
    tm_budget = max(8, (budget - fixed) // per_row)
    tm_eff = _pick_tm(M, min(tm, tm_budget))
    M_pad = _round_up(M, tm_eff)

    # Multi-TensorCore chips (v7x): ensure the "parallel" row axis has >= 2
    # steps so both cores get work.
    if _num_tensorcores() > 1 and M_pad // tm_eff < 2 and tm_eff >= 16:
        tm_eff = max(8, (tm_eff // 2 // 8) * 8)
        M_pad = _round_up(M, tm_eff)

    nm = M_pad // tm_eff
    nv = V_pad // tv_eff

    # ---- Operand prep -----------------------------------------------------
    x2d = x.reshape(M, H)
    if M_pad != M:
        x2d = jnp.pad(x2d, ((0, M_pad - M), (0, 0)))
    # One-time (V, H) -> (H, V) transpose so the MXU contraction is the native
    # ((1,),(0,)) form; cost amortizes over the nm row tiles that re-stream W.
    w_t = weight.T
    b = bias
    if V_pad != V:
        # Padded vocab columns get a huge negative bias so they never affect
        # the softmax normalization; sliced off before returning.
        w_t = jnp.pad(w_t, ((0, 0), (0, V_pad - V)))
        b = jnp.pad(b, (0, V_pad - V), constant_values=-1e30)
    b2d = b.reshape(1, V_pad)

    kernel = functools.partial(_mlm_kernel, nv=nv, tv=tv_eff)

    cost = pl.CostEstimate(
        flops=2 * M_pad * H * V_pad,
        transcendentals=M_pad * V_pad,
        bytes_accessed=(
            M_pad * H * x_bytes
            + nm * V_pad * H * w_bytes      # weight re-streamed per row tile
            + V_pad * 4
            + M_pad * V_pad * o_bytes
        ),
    )

    out = pl.pallas_call(
        kernel,
        out_shape=jax.ShapeDtypeStruct((M_pad, V_pad), out_dtype),
        grid_spec=pltpu.PrefetchScalarGridSpec(
            num_scalar_prefetch=0,
            grid=(nm, nv),
            in_specs=[
                pl.BlockSpec((tm_eff, H), lambda i, j: (i, 0)),   # rows of x
                pl.BlockSpec((H, tv_eff), lambda i, j: (0, j)),   # W^T vocab tile
                pl.BlockSpec((1, tv_eff), lambda i, j: (0, j)),   # bias tile
            ],
            out_specs=pl.BlockSpec((tm_eff, V_pad), lambda i, j: (i, 0)),
            scratch_shapes=[
                pltpu.VMEM((tm_eff, 1), jnp.float32),   # running max
                pltpu.VMEM((tm_eff, 1), jnp.float32),   # running sum-of-exp
            ],
        ),
        compiler_params=pltpu.CompilerParams(
            dimension_semantics=("parallel", "arbitrary"),
            vmem_limit_bytes=int(vmem_cap * 0.85),
        ),
        cost_estimate=cost,
    )(x2d, w_t, b2d)

    if M_pad != M or V_pad != V:
        out = out[:M, :V]
    return out.reshape(B, S, V)


def _reference(x, weight, bias):
    logits = jnp.einsum("bsh,vh->bsv", x, weight) + bias
    return jax.nn.log_softmax(logits, axis=-1)


if __name__ == "__main__":
    # Small shapes consistent with the module: (batch, seq, hidden) -> (batch, seq, vocab)
    batch, seq, hidden, vocab = 2, 8, 32, 128

    key = jax.random.PRNGKey(0)
    kx, kw, kb = jax.random.split(key, 3)

    x = jax.random.normal(kx, (batch, seq, hidden), dtype=jnp.float32)
    # Mimic nn.Linear's uniform(-1/sqrt(H), 1/sqrt(H)) init.
    bound = 1.0 / (hidden ** 0.5)
    weight = jax.random.uniform(
        kw, (vocab, hidden), minval=-bound, maxval=bound, dtype=jnp.float32
    )
    bias = jax.random.uniform(
        kb, (vocab,), minval=-bound, maxval=bound, dtype=jnp.float32
    )

    out = masked_language_model(x, weight, bias)
    out = jax.block_until_ready(out)

    ref = _reference(x, weight, bias)
    assert out.shape == (batch, seq, vocab)
    assert out.dtype == jnp.float32
    assert jnp.allclose(out, ref, atol=1e-5, rtol=1e-5), "mismatch vs reference"

    print("KERNEL_OK")
</pallas_src>

<mosaic_0001>
module attributes {stable_mosaic.version = 11 : i64} {
  func.func @_mlm_kernel(%arg0: i32, %arg1: i32, %arg2: memref<16x32xf32, #tpu.memory_space<vmem>>, %arg3: memref<32x128xf32, #tpu.memory_space<vmem>>, %arg4: memref<1x128xf32, #tpu.memory_space<vmem>>, %arg5: memref<16x128xf32, #tpu.memory_space<vmem>>, %arg6: memref<16x1xf32, #tpu.memory_space<vmem>>, %arg7: memref<16x1xf32, #tpu.memory_space<vmem>>) attributes {dimension_semantics = [#tpu.dimension_semantics<parallel>, #tpu.dimension_semantics<arbitrary>], iteration_bounds = array<i64: 1, 1>, scalar_prefetch = 0 : i64, scratch_operands = 2 : i64, tpu.core_type = #tpu.core_type<tc>, window_params = [{transform_indices = @transform_0, window_bounds = array<i64: 16, 32>}, {transform_indices = @transform_1, window_bounds = array<i64: 32, 128>}, {transform_indices = @transform_2, window_bounds = array<i64: 1, 128>}, {transform_indices = @transform_3, window_bounds = array<i64: 16, 128>}]} {
    %c0_i32 = arith.constant 0 : i32
    %0 = arith.cmpi eq, %arg1, %c0_i32 : i32
    %1 = arith.extui %0 : i1 to i32
    %c0_i32_0 = arith.constant 0 : i32
    %2 = arith.cmpi ne, %1, %c0_i32_0 : i32
    scf.if %2 {
      %cst_19 = arith.constant 0xFF800000 : f32
      %32 = vector.broadcast %cst_19 : f32 to vector<16x1xf32>
      %c0_20 = arith.constant 0 : index
      %c0_21 = arith.constant 0 : index
      %33 = vector.load %arg6[%c0_20, %c0_21] : memref<16x1xf32, #tpu.memory_space<vmem>>, vector<16x1xf32>
      tpu.vector_store %arg6[%c0_20, %c0_21], %32 {strides = array<i32>} : memref<16x1xf32, #tpu.memory_space<vmem>>, vector<16x1xf32>,
      %cst_22 = arith.constant 0.000000e+00 : f32
      %34 = vector.broadcast %cst_22 : f32 to vector<16x1xf32>
      %c0_23 = arith.constant 0 : index
      %c0_24 = arith.constant 0 : index
      %35 = vector.load %arg7[%c0_23, %c0_24] : memref<16x1xf32, #tpu.memory_space<vmem>>, vector<16x1xf32>
      tpu.vector_store %arg7[%c0_23, %c0_24], %34 {strides = array<i32>} : memref<16x1xf32, #tpu.memory_space<vmem>>, vector<16x1xf32>,
    } else {
    }
    %c0 = arith.constant 0 : index
    %c0_1 = arith.constant 0 : index
    %3 = vector.load %arg2[%c0, %c0_1] : memref<16x32xf32, #tpu.memory_space<vmem>>, vector<16x32xf32>
    %c0_2 = arith.constant 0 : index
    %c0_3 = arith.constant 0 : index
    %4 = vector.load %arg3[%c0_2, %c0_3] : memref<32x128xf32, #tpu.memory_space<vmem>>, vector<32x128xf32>
    %cst = arith.constant dense<0.000000e+00> : vector<16x128xf32>
    %5 = tpu.matmul %3, %4, %cst {dimension_numbers = #tpu.dot_dimension_numbers<[1], [0], [0], [1], [0, 0, 1, 1], [], []>} : vector<16x32xf32>, vector<32x128xf32>, vector<16x128xf32> -> vector<16x128xf32>
    %c0_4 = arith.constant 0 : index
    %c0_5 = arith.constant 0 : index
    %6 = vector.load %arg4[%c0_4, %c0_5] : memref<1x128xf32, #tpu.memory_space<vmem>>, vector<1x128xf32>
    %7 = vector.broadcast %6 : vector<1x128xf32> to vector<16x128xf32>
    %8 = arith.addf %5, %7 : vector<16x128xf32>
    %c0_6 = arith.constant 0 : index
    %c0_7 = arith.constant 0 : index
    %9 = vector.load %arg6[%c0_6, %c0_7] : memref<16x1xf32, #tpu.memory_space<vmem>>, vector<16x1xf32>
    %cst_8 = arith.constant dense<0xFF800000> : vector<16xf32>
    %10 = vector.multi_reduction <maximumf>, %8, %cst_8 [1] : vector<16x128xf32> to vector<16xf32>
    %11 = vector.shape_cast %10 : vector<16xf32> to vector<16x1xf32>
    %12 = arith.maximumf %9, %11 : vector<16x1xf32>
    %c0_9 = arith.constant 0 : index
    %c0_10 = arith.constant 0 : index
    %13 = vector.load %arg7[%c0_9, %c0_10] : memref<16x1xf32, #tpu.memory_space<vmem>>, vector<16x1xf32>
    %14 = arith.subf %9, %12 : vector<16x1xf32>
    %15 = math.exp %14 : vector<16x1xf32>
    %16 = arith.mulf %13, %15 : vector<16x1xf32>
    %17 = vector.broadcast %12 : vector<16x1xf32> to vector<16x128xf32>
    %18 = arith.subf %8, %17 : vector<16x128xf32>
    %19 = math.exp %18 : vector<16x128xf32>
    %cst_11 = arith.constant dense<0.000000e+00> : vector<16xf32>
    %20 = vector.multi_reduction <add>, %19, %cst_11 [1] : vector<16x128xf32> to vector<16xf32>
    %21 = vector.shape_cast %20 : vector<16xf32> to vector<16x1xf32>
    %22 = arith.addf %16, %21 : vector<16x1xf32>
    %c0_12 = arith.constant 0 : index
    %c0_13 = arith.constant 0 : index
    %23 = vector.load %arg7[%c0_12, %c0_13] : memref<16x1xf32, #tpu.memory_space<vmem>>, vector<16x1xf32>
    tpu.vector_store %arg7[%c0_12, %c0_13], %22 {strides = array<i32>} : memref<16x1xf32, #tpu.memory_space<vmem>>, vector<16x1xf32>,
    %c0_14 = arith.constant 0 : index
    %c0_15 = arith.constant 0 : index
    %24 = vector.load %arg6[%c0_14, %c0_15] : memref<16x1xf32, #tpu.memory_space<vmem>>, vector<16x1xf32>
    tpu.vector_store %arg6[%c0_14, %c0_15], %12 {strides = array<i32>} : memref<16x1xf32, #tpu.memory_space<vmem>>, vector<16x1xf32>,
    %c128_i32 = arith.constant 128 : i32
    %25 = arith.muli %arg1, %c128_i32 : i32
    %26 = tpu.assume_multiple %25, 128 : i32
    %c0_16 = arith.constant 0 : index
    %27 = arith.index_cast %26 : i32 to index
    %28 = vector.load %arg5[%c0_16, %27] : memref<16x128xf32, #tpu.memory_space<vmem>>, vector<16x128xf32>
    tpu.vector_store %arg5[%c0_16, %27], %8 {strides = array<i32>} : memref<16x128xf32, #tpu.memory_space<vmem>>, vector<16x128xf32>,
    %c0_i32_17 = arith.constant 0 : i32
    %29 = arith.cmpi eq, %arg1, %c0_i32_17 : i32
    %30 = arith.extui %29 : i1 to i32
    %c0_i32_18 = arith.constant 0 : i32
    %31 = arith.cmpi ne, %30, %c0_i32_18 : i32
    scf.if %31 {
      %c0_19 = arith.constant 0 : index
      %c0_20 = arith.constant 0 : index
      %32 = vector.load %arg6[%c0_19, %c0_20] : memref<16x1xf32, #tpu.memory_space<vmem>>, vector<16x1xf32>
      %c0_21 = arith.constant 0 : index
      %c0_22 = arith.constant 0 : index
      %33 = vector.load %arg7[%c0_21, %c0_22] : memref<16x1xf32, #tpu.memory_space<vmem>>, vector<16x1xf32>
      %34 = math.log %33 : vector<16x1xf32>
      %35 = arith.addf %32, %34 : vector<16x1xf32>
      %c0_23 = arith.constant 0 : index
      %c0_24 = arith.constant 0 : index
      %36 = vector.load %arg5[%c0_23, %c0_24] : memref<16x128xf32, #tpu.memory_space<vmem>>, vector<16x128xf32>
      %37 = vector.broadcast %35 : vector<16x1xf32> to vector<16x128xf32>
      %38 = arith.subf %36, %37 : vector<16x128xf32>
      %c0_25 = arith.constant 0 : index
      %c0_26 = arith.constant 0 : index
      %39 = vector.load %arg5[%c0_25, %c0_26] : memref<16x128xf32, #tpu.memory_space<vmem>>, vector<16x128xf32>
      tpu.vector_store %arg5[%c0_25, %c0_26], %38 {strides = array<i32>} : memref<16x128xf32, #tpu.memory_space<vmem>>, vector<16x128xf32>,
    } else {
    }
    return
  }
  func.func @transform_0(%arg0: i32, %arg1: i32) -> (i32, i32) {
    %c0_i32 = arith.constant 0 : i32
    %c0_i32_0 = arith.constant 0 : i32
    return %arg0, %c0_i32 : i32, i32
  }
  func.func @transform_1(%arg0: i32, %arg1: i32) -> (i32, i32) {
    %c0_i32 = arith.constant 0 : i32
    %c0_i32_0 = arith.constant 0 : i32
    return %c0_i32, %arg1 : i32, i32
  }
  func.func @transform_2(%arg0: i32, %arg1: i32) -> (i32, i32) {
    %c0_i32 = arith.constant 0 : i32
    %c0_i32_0 = arith.constant 0 : i32
    return %c0_i32, %arg1 : i32, i32
  }
  func.func @transform_3(%arg0: i32, %arg1: i32) -> (i32, i32) {
    %c0_i32 = arith.constant 0 : i32
    %c0_i32_0 = arith.constant 0 : i32
    return %arg0, %c0_i32 : i32, i32
  }
}

</mosaic_0001>

<llo_original>
// kernel: masked_language_model.1
$region0: #{masked_language_model.1}
  #allocation0 [shape = 'u32[]', space=smem, size = 0x4, offset = 0x4, fixed_abs, tag = 'smem constant byte address 0x4 - core index']
  #allocation1 [shape = 'u32[144,128]{1,0:T(1,128)}', space=vmem, size = 0x12000, scoped, tag = 'internal scratch']
  #allocation2 [shape = 'f32[16,1]{1,0:T(8,128)}', space=vmem, size = 0x2000, scoped, tag = 'scratch operand']
  #allocation3 [shape = 'f32[16,1]{1,0:T(8,128)}', space=vmem, size = 0x2000, scoped, tag = 'scratch operand']
  %s0 = inlined_call_operand.hbm [shape: f32[16,32], index: 0, kind: input, shape index: {}]
  %s1 = inlined_call_operand.hbm [shape: f32[32,128], index: 1, kind: input, shape index: {}]
  %s2 = inlined_call_operand.vmem [shape: f32[1,128], index: 2, kind: input, shape index: {}]
  %s3 = inlined_call_operand.hbm [shape: f32[16,128], index: 3, kind: output, shape index: {}]
  %s4 = sld [smem:[#allocation0]]
  $region38: #{masked_language_model.1} parent=0
    _
  %s6 = ssub.s32 1, %s4
  %s7 = scalar_select 0, %s6, %s4
  $region1: #{masked_language_model.1} parent=0
    #allocation4 [shape = 'u8[8192]{0}', space=vmem, size = 0x2000, scoped, tag = 'input window, operand 0, single buffered']
    #allocation5 [shape = 's32[1]{0}', space=sflag, size = 0x4, scoped, tag = 'scoped memory for masked_language_model.1']
    #allocation6 [shape = 's32[1]{0}', space=sflag, size = 0x4, scoped, tag = 'scoped memory for masked_language_model.1']
    #allocation7 [shape = 'u8[16384]{0}', space=vmem, size = 0x4000, scoped, tag = 'input window, operand 1, single buffered']
    #allocation8 [shape = 's32[1]{0}', space=sflag, size = 0x4, scoped, tag = 'scoped memory for masked_language_model.1']
    #allocation9 [shape = 'u8[8192]{0}', space=vmem, size = 0x2000, scoped, tag = 'output window, operand 0, single buffered']
    %8 = vsyncpa [#allocation5], 0
    %9 = vsyncpa [#allocation8], 0
    %10 = vsyncpa [#allocation6], 0
    // Predicated region
    $region2: #{masked_language_model.1} parent=1 // pred_check
      _
    $region3: #{masked_language_model.1} parent=1 // pred_check_branch
      %12 = sbr.rel (0) target = $region5
    $region4: #{masked_language_model.1} parent=1 // pred_region
      %s14 = ssub.s32 256, 256
      %15 = vsyncadd [#allocation5], %s14
      %s16 = sshll.u32 [#allocation4], 4
      %s17 = int_to_ptr.vmem [resolvable:$true] %s16
      %22 = dma.hbm_to_vmem [thread:$0]  %s0, 256, %s17, [#allocation5], 128, 128, 8
    $region5: #{masked_language_model.1} parent=1 // pred_fallthru
      _
    // Predicated region
    $region6: #{masked_language_model.1} parent=1 // pred_check
      _
    $region7: #{masked_language_model.1} parent=1 // pred_check_branch
      %24 = sbr.rel (0) target = $region9
    $region8: #{masked_language_model.1} parent=1 // pred_region
      %s26 = ssub.s32 512, 512
      %27 = vsyncadd [#allocation8], %s26
      %s28 = sshll.u32 [#allocation7], 4
      %s29 = int_to_ptr.vmem [resolvable:$true] %s28
      %34 = dma.hbm_to_vmem [thread:$0]  %s1, 512, %s29, [#allocation8], 128, 128, 8
    $region9: #{masked_language_model.1} parent=1 // pred_fallthru
      _
    // Predicated region
    $region10: #{masked_language_model.1} parent=1 // pred_check
      _
    $region11: #{masked_language_model.1} parent=1 // pred_check_branch
      %36 = sbr.rel (0) target = $region13
    $region12: #{masked_language_model.1} parent=1 // pred_region
      _
    $region13: #{masked_language_model.1} parent=1 // pred_fallthru
      _
    // Predicated region
    $region14: #{masked_language_model.1} parent=1 // pred_check
      _
    $region15: #{masked_language_model.1} parent=1 // pred_check_branch
      %38 = sbr.rel (0) target = $region17
    $region16: #{masked_language_model.1} parent=1 // pred_region
      %39 = dma.done [#allocation5], 256
    $region17: #{masked_language_model.1} parent=1 // pred_fallthru
      _
    // Predicated region
    $region18: #{masked_language_model.1} parent=1 // pred_check
      _
    $region19: #{masked_language_model.1} parent=1 // pred_check_branch
      %41 = sbr.rel (0) target = $region21
    $region20: #{masked_language_model.1} parent=1 // pred_region
      %42 = dma.done [#allocation8], 512
    $region21: #{masked_language_model.1} parent=1 // pred_fallthru
      _
    %p43 = scmp.eq.s32.totalorder 0, 0
    // Predicated region
    $region22: #{masked_language_model.1} parent=1 // pred_check
      %p44 = pneg %p43
    $region23: #{masked_language_model.1} parent=1 // pred_check_branch
      %46 = sbr.rel (%p44) target = $region25
    $region24: #{masked_language_model.1} parent=1 // pred_region
      %vm47 = vcmask 7168
      %48 = vst.msk [vmem:[#allocation2] sm:$0xff] %vm47, -inf
      %49 = vst.msk [vmem:[#allocation2 + $0x8] sm:$0xff] %vm47, -inf
      %50 = vst.msk [vmem:[#allocation3] sm:$0xff] %vm47, 0.0
      %51 = vst.msk [vmem:[#allocation3 + $0x8] sm:$0xff] %vm47, 0.0
    $region25: #{masked_language_model.1} parent=1 // pred_fallthru
      _
    %v52 = vld [vmem:[#allocation4] sm:$0xff]
    %v53 = vld [vmem:[#allocation4 + $0x8] sm:$0xff]
    %v54 = vld [vmem:[#allocation7] sm:$0xff]
    %v55 = vld [vmem:[#allocation7 + $0x8] sm:$0xff]
    %v56 = vld [vmem:[#allocation7 + $0x10] sm:$0xff]
    %v57 = vld [vmem:[#allocation7 + $0x18] sm:$0xff]
    %v58 = vld [vmem:[%s2] sm:$0x1]
    %v60 = vlaneseq
    %v61 = vshrl.u32 %v60, 7
    %v62 = vsub.s32 0, %v61
    %v63 = vrot.slane %v58, %v62
    %vm65 = vcmask 261120
    %v67 = vsel %vm65, %v52, 0
    %v70 = vsel %vm65, %v53, 0
    %72 = vmatprep.subr.mxu0 0.0
    %73 = vmatpush1.msra.mxu0 %v54
    %74 = vmatprep.subr.mxu0 0.0
    %75 = vmatpush1.msra.mxu0 %v55
    %76 = vmatprep.subr.mxu0 0.0
    %77 = vmatpush1.msra.mxu0 %v56
    %78 = vmatprep.subr.mxu0 0.0
    %79 = vmatpush1.msra.mxu0 %v57
    %80 = vmatprep.subr.mxu0 0.0
    %81 = vmatpush1.msra.mxu0 0.0
    %82 = vmatprep.subr.mxu0 0.0
    %83 = vmatpush1.msra.mxu0 0.0
    %84 = vmatprep.subr.mxu0 0.0
    %85 = vmatpush1.msra.mxu0 0.0
    %86 = vmatprep.subr.mxu0 0.0
    %87 = vmatpush1.msra.mxu0 0.0
    %88 = vmatprep.subr.mxu0 0.0
    %89 = vmatpush1.msra.mxu0 0.0
    %90 = vmatprep.subr.mxu0 0.0
    %91 = vmatpush1.msra.mxu0 0.0
    %92 = vmatprep.subr.mxu0 0.0
    %93 = vmatpush1.msra.mxu0 0.0
    %94 = vmatprep.subr.mxu0 0.0
    %95 = vmatpush1.msra.mxu0 0.0
    %96 = vmatprep.subr.mxu0 0.0
    %97 = vmatpush1.msra.mxu0 0.0
    %98 = vmatprep.subr.mxu0 0.0
    %99 = vmatpush1.msra.mxu0 0.0
    %100 = vmatprep.subr.mxu0 0.0
    %101 = vmatpush1.msra.mxu0 0.0
    %102 = vmatprep.subr.mxu0 0.0
    %103 = vmatpush1.msra.mxu0 0.0
    %104 = vmatprep.subr.mxu0 0.0
    %105 = vmatpush1.msra.mxu0 0.0
    %106 = vmatprep.subr.mxu0 0.0
    %107 = vmatpush1.msra.mxu0 0.0
    %108 = vmatprep.subr.mxu0 0.0
    %109 = vmatpush1.msra.mxu0 0.0
    %110 = vmatprep.subr.mxu0 0.0
    %111 = vmatpush1.msra.mxu0 0.0
    %112 = vmatprep.subr.mxu0 0.0
    %113 = vmatpush1.msra.mxu0 0.0
    %114 = vmatprep.subr.mxu0 0.0
    %115 = vmatpush1.msra.mxu0 0.0
    %116 = vmatprep.subr.mxu0 0.0
    %117 = vmatpush1.msra.mxu0 0.0
    %118 = vmatprep.subr.mxu0 0.0
    %119 = vmatpush1.msra.mxu0 0.0
    %120 = vmatprep.subr.mxu0 0.0
    %121 = vmatpush1.msra.mxu0 0.0
    %122 = vmatprep.subr.mxu0 0.0
    %123 = vmatpush1.msra.mxu0 0.0
    %124 = vmatprep.subr.mxu0 0.0
    %125 = vmatpush1.msra.mxu0 0.0
    %126 = vmatprep.subr.mxu0 0.0
    %127 = vmatpush1.msra.mxu0 0.0
    %128 = vmatprep.subr.mxu0 0.0
    %129 = vmatpush1.msra.mxu0 0.0
    %130 = vmatprep.subr.mxu0 0.0
    %131 = vmatpush1.msra.mxu0 0.0
    %132 = vmatprep.subr.mxu0 0.0
    %133 = vmatpush1.msra.mxu0 0.0
    %134 = vmatprep.subr.mxu0 0.0
    %135 = vmatpush1.msra.mxu0 0.0
    %136 = vmatprep.mubr.f32.mxu0 0.0
    %137 = vmatmul.mubr.f32.gmra.mrb[0].mxu0 %v67
    %v138 = vpop.f32.mrb[0].mxu0
    %v139 = vadd.f32 %v63, %v138
    %v140 = vpop.f32.mrb[0].mxu0
    %141 = vmatprep.mubr.f32.mxu0 0.0
    %142 = vmatmul.mubr.f32.gmra.mrb[0].mxu0 %v70
    %v143 = vpop.f32.mrb[0].mxu0
    %v144 = vadd.f32 %v63, %v143
    %v145 = vpop.f32.mrb[0].mxu0
    %146 = vdwg.mxu0
    %v147 = vld [vmem:[#allocation2] sm:$0xff]
    %v148 = vld [vmem:[#allocation2 + $0x8] sm:$0xff]
    %149 = vmax.xlane.f32.xlu0 %v139
    %v150 = vpop.xlane.xlu0 %149
    %151 = vmax.xlane.f32.xlu0 %v144
    %v152 = vpop.xlane.xlu0 %151
    %v153 = vmax.f32 %v147, %v150
    %v154 = vmax.f32 %v148, %v152
    %v155 = vld [vmem:[#allocation3] sm:$0xff]
    %v156 = vld [vmem:[#allocation3 + $0x8] sm:$0xff]
    %v157 = vsub.f32 %v147, %v153
    %v158 = vsub.f32 %v148, %v154
    %v159 = vmul.f32 %v157, 1.442695
    %v160 = vpow.pop %v159
    %v161 = vmul.f32 %v158, 1.442695
    %v162 = vpow.pop %v161
    %v163 = vmul.f32 %v155, %v160
    %v164 = vmul.f32 %v156, %v162
    %166 = vset.pattern.permute.xlu0 0
    %167 = vperm.xlu0 %166, %v153
    %v168 = vpop.permute.xlu0 %167
    %171 = vset.pattern.permute.xlu0 0
    %172 = vperm.xlu0 %171, %v154
    %v173 = vpop.permute.xlu0 %172
    %v175 = vsub.f32 %v139, %v168
    %v176 = vsub.f32 %v144, %v173
    %v177 = vmul.f32 %v175, 1.442695
    %v178 = vpow.pop %v177
    %v179 = vmul.f32 %v176, 1.442695
    %v180 = vpow.pop %v179
    %181 = vadd.xlane.f32.xlu0 %v178
    %v182 = vpop.xlane.xlu0 %181
    %183 = vadd.xlane.f32.xlu0 %v180
    %v184 = vpop.xlane.xlu0 %183
    %v185 = vadd.f32 %v163, %v182
    %v186 = vadd.f32 %v164, %v184
    %vm187 = vcmask 7168
    %188 = vst.msk [vmem:[#allocation3] sm:$0xff] %vm187, %v185
    %189 = vst.msk [vmem:[#allocation3 + $0x8] sm:$0xff] %vm187, %v186
    %190 = vst.msk [vmem:[#allocation2] sm:$0xff] %vm187, %v153
    %191 = vst.msk [vmem:[#allocation2 + $0x8] sm:$0xff] %vm187, %v154
    %s192 = smul.u32 0, 128
    %s193 = sshra.s32 %s192, 7
    %s194 = sand.u32 %s192, 127
    %s195 = scalar_lea.vmem [#allocation9], %s193
    %196 = vst [vmem:[%s195] sm:$0xff] %v139
    %197 = vst [vmem:[%s195 + $0x8] sm:$0xff] %v144
    // Predicated region
    $region26: #{masked_language_model.1} parent=1 // pred_check
      %p198 = pneg %p43
    $region27: #{masked_language_model.1} parent=1 // pred_check_branch
      %200 = sbr.rel (%p198) target = $region29
    $region28: #{masked_language_model.1} parent=1 // pred_region
      %v201 = vld [vmem:[#allocation2] sm:$0xff]
      %v202 = vld [vmem:[#allocation2 + $0x8] sm:$0xff]
      %v203 = vld [vmem:[#allocation3] sm:$0xff]
      %v204 = vld [vmem:[#allocation3 + $0x8] sm:$0xff]
      %v205 = vlog2.pop %v203
      %v206 = vmul.f32 %v205, 0.6931472
      %v207 = vlog2.pop %v204
      %v208 = vmul.f32 %v207, 0.6931472
      %v209 = vadd.f32 %v201, %v206
      %v210 = vadd.f32 %v202, %v208
      %v211 = vld [vmem:[#allocation9] sm:$0xff]
      %v212 = vld [vmem:[#allocation9 + $0x8] sm:$0xff]
      %214 = vset.pattern.permute.xlu0 0
      %215 = vperm.xlu0 %214, %v209
      %v216 = vpop.permute.xlu0 %215
      %219 = vset.pattern.permute.xlu0 0
      %220 = vperm.xlu0 %219, %v210
      %v221 = vpop.permute.xlu0 %220
      %v223 = vsub.f32 %v211, %v216
      %v224 = vsub.f32 %v212, %v221
      %225 = vst [vmem:[#allocation9] sm:$0xff] %v223
      %226 = vst [vmem:[#allocation9 + $0x8] sm:$0xff] %v224
    $region29: #{masked_language_model.1} parent=1 // pred_fallthru
      _
    // Predicated region
    $region30: #{masked_language_model.1} parent=1 // pred_check
      _
    $region31: #{masked_language_model.1} parent=1 // pred_check_branch
      %228 = sbr.rel (0) target = $region33
    $region32: #{masked_language_model.1} parent=1 // pred_region
      %s230 = ssub.s32 256, 256
      %231 = vsyncadd [#allocation6], %s230
      %s232 = sshll.u32 [#allocation9], 4
      %s233 = int_to_ptr.vmem [resolvable:$true] %s232
      %238 = dma.vmem_to_hbm [thread:$0]  %s233, 256, %s3, [#allocation6], 128, 128, 8
    $region33: #{masked_language_model.1} parent=1 // pred_fallthru
      _
    // Predicated region
    $region34: #{masked_language_model.1} parent=1 // pred_check
      _
    $region35: #{masked_language_model.1} parent=1 // pred_check_branch
      %240 = sbr.rel (0) target = $region37
    $region36: #{masked_language_model.1} parent=1 // pred_region
      %241 = dma.done [#allocation6], 256
    $region37: #{masked_language_model.1} parent=1 // pred_fallthru
      _
    %242 = vsyncpa [#allocation5], 1
    %243 = vsyncpa [#allocation8], 1
    %244 = vsyncpa [#allocation6], 1

</llo_original>
